<compile_context>
chip_gen: v7x
topology: tpu7x:2x2x1
jax: 0.10.0
libtpu: 0.0.40
codegen_flags: <defaults>
</compile_context>

<pallas_src>
import numpy as np
import jax
import jax.numpy as jnp
from jax.experimental import pallas as pl
from jax.experimental.pallas import tpu as pltpu


# ----------------------------------------------------------------------------------
# Pallas kernels
# ----------------------------------------------------------------------------------
def _value_conv_kernel(k_ref, mask_ref, w_ref, b_ref, out_ref):
    # k_ref: (C, N*S)  mask_ref: (1, N*S)  w_ref: (C, C)  b_ref: (C, 1)  out: (C, N*S)
    v = jnp.dot(w_ref[...], k_ref[...], preferred_element_type=jnp.float32)
    v = (v + b_ref[...]) * (1.0 - mask_ref[...])          # masked_fill(mask, 0)
    out_ref[...] = v.astype(out_ref.dtype)


def _linear_kernel(x_ref, w_ref, b_ref, o_ref):
    # x: (rb, Cin)  w: (Cout, Cin)  b: (1, Cout)  -> o: (rb, Cout)   (y = x @ W.T + b)
    y = jax.lax.dot_general(x_ref[...], w_ref[...], (((1,), (1,)), ((), ())),
                            preferred_element_type=jnp.float32)
    o_ref[...] = (y + b_ref[...]).astype(o_ref.dtype)


def _make_sampling_kernel(spatial_shapes, LP4, Ch, H_blk):
    """Per grid step: H_blk heads.  For each level, build the weighted one-hot sampling matrix
    B (H_blk, 4*L*P, HW) with a single vectorized compare and contract it against the value block
    (H_blk, Ch, HW) on the MXU; the corner+point reduction is a second small matmul against a
    constant reduction matrix, written lane-packed as (L, H_blk*Ch)."""
    def kernel(v_ref, idx_ref, con_ref, red_ref, out_ref):
        # v_ref:   (H_blk, Ch, S)
        # idx_ref: (H_blk, Fl, LP4) int32   flat pixel index per (corner, query, point)
        # con_ref: (H_blk, Fl, LP4) f32     bilinear weight * attention weight (0 if OOB)
        # red_ref: (L, LP4) f32             corner+point reduction matrix
        # out_ref: (1, L, H_blk*Ch)
        acc = jnp.zeros((H_blk, LP4, Ch), jnp.float32)
        off = 0
        for f, (H, W) in enumerate(spatial_shapes):
            HW = H * W
            # TODO(synk): at production level sizes (HW ~ 1.5e4, L ~ 300) chunk HW into <=2048-lane
            # slabs here to bound the live (LP4, HW) one-hot within v7x's 64 MiB VMEM.
            v = v_ref[:, :, off:off + HW]                                   # (H_blk, Ch, HW)
            idx = idx_ref[:, f, :]                                          # (H_blk, LP4)
            con = con_ref[:, f, :]
            hw_iota = jax.lax.broadcasted_iota(jnp.int32, (H_blk, LP4, HW), 2)
            B = jnp.where(hw_iota == idx[:, :, None], con[:, :, None], 0.0)  # (H_blk, LP4, HW)
            # batched matmul: (H_blk, LP4, HW) x (H_blk, Ch, HW) -> (H_blk, LP4, Ch)
            acc = acc + jax.lax.dot_general(B, v, (((2,), (2,)), ((0,), (0,))),
                                            preferred_element_type=jnp.float32)
            off += HW
        red = red_ref[...]                                                   # (L, LP4)
        for j in range(H_blk):                                               # small static loop
            res = jnp.dot(red, acc[j], preferred_element_type=jnp.float32)   # (L, Ch)
            out_ref[0, :, j * Ch:(j + 1) * Ch] = res.astype(out_ref.dtype)
    return kernel


# ----------------------------------------------------------------------------------
# pallas_call wrappers
# ----------------------------------------------------------------------------------
def value_conv_pallas(kt, mask_row, w, b):
    # kt: (C, N*S)  mask_row: (1, N*S)
    C, NS = kt.shape
    # TODO(synk): at production S (~2e4, C=256) tile NS in >=512-lane chunks with grid=(N, S//tS)
    # and set vmem_limit_bytes so blocks fit v7x's 64 MiB VMEM.
    return pl.pallas_call(
        _value_conv_kernel,
        out_shape=jax.ShapeDtypeStruct((C, NS), jnp.float32),
        grid=(1,),
        in_specs=[
            pl.BlockSpec((C, NS), lambda i: (0, 0)),
            pl.BlockSpec((1, NS), lambda i: (0, 0)),
            pl.BlockSpec((C, C), lambda i: (0, 0)),
            pl.BlockSpec((C, 1), lambda i: (0, 0)),
        ],
        out_specs=pl.BlockSpec((C, NS), lambda i: (0, 0)),
    )(kt, mask_row, w, b.reshape(C, 1))


def _pick_row_block(R):
    if R % 8 != 0:
        return R
    for cand in (256, 128, 64, 32, 16, 8):
        if R % cand == 0 and R // cand >= 2:
            return cand
    return R


def linear_pallas(x, w, b):
    R, Cin = x.shape
    Cout = w.shape[0]
    rb = _pick_row_block(R)
    return pl.pallas_call(
        _linear_kernel,
        out_shape=jax.ShapeDtypeStruct((R, Cout), jnp.float32),
        grid=(R // rb,),
        in_specs=[
            pl.BlockSpec((rb, Cin), lambda i: (i, 0)),
            pl.BlockSpec((Cout, Cin), lambda i: (0, 0)),
            pl.BlockSpec((1, Cout), lambda i: (0, 0)),
        ],
        out_specs=pl.BlockSpec((rb, Cout), lambda i: (i, 0)),
        compiler_params=pltpu.CompilerParams(dimension_semantics=("parallel",)),
    )(x, w, b.reshape(1, Cout))


def sampling_pallas(vh, idx_all, con_all, red, spatial_shapes, H_blk):
    NM, Ch, S = vh.shape
    _, Fl, LP4 = idx_all.shape
    L = red.shape[0]
    assert NM % H_blk == 0
    G = NM // H_blk
    kernel = _make_sampling_kernel(tuple(spatial_shapes), LP4, Ch, H_blk)
    return pl.pallas_call(
        kernel,
        out_shape=jax.ShapeDtypeStruct((G, L, H_blk * Ch), jnp.float32),
        grid=(G,),
        in_specs=[
            pl.BlockSpec((H_blk, Ch, S), lambda g: (g, 0, 0)),
            pl.BlockSpec((H_blk, Fl, LP4), lambda g: (g, 0, 0)),
            pl.BlockSpec((H_blk, Fl, LP4), lambda g: (g, 0, 0)),
            pl.BlockSpec((L, LP4), lambda g: (0, 0)),
        ],
        out_specs=pl.BlockSpec((1, L, H_blk * Ch), lambda g: (g, 0, 0)),
        compiler_params=pltpu.CompilerParams(dimension_semantics=("parallel",)),
    )(vh, idx_all, con_all, red)


# ----------------------------------------------------------------------------------
# Forward pass (Pallas kernels for conv / linears / sampling; elementwise glue in JAX)
# ----------------------------------------------------------------------------------
def sampling_attention_ra_forward(params, q, q_pos, k, k_pos, key_padding_mask,
                                  pos_centers, spatial_shape, M, P):
    del q_pos, k_pos  # unused in the reference forward
    spatial_shape_, _valid_sizes, valid_scales = spatial_shape  # valid_sizes unused (as in reference)
    L, N, C = q.shape
    S = k.shape[2]
    Fl = len(spatial_shape_)
    NM, Ch = N * M, C // M
    LP4 = 4 * L * P

    # ---- value = 1x1 conv over channels + masked_fill  (single lane-dense Pallas matmul) ----
    kt = jnp.transpose(k.astype(jnp.float32), (1, 0, 2)).reshape(C, N * S)      # (C, N*S)
    mask_row = key_padding_mask.astype(jnp.float32).reshape(1, N * S)
    val_flat = value_conv_pallas(kt, mask_row, params["vc_w"], params["vc_b"])  # (C, N*S)
    value = jnp.transpose(val_flat.reshape(C, N, S), (1, 0, 2))                 # (N, C, S)
    vh = value.reshape(NM, Ch, S)                                               # per-head value tiles

    # ---- fused sampling-weight + sampling-loc linear  (one Pallas call) ----
    q2 = q.reshape(L * N, C).astype(jnp.float32)
    n_wt = params["wt_w"].shape[0]
    w_cat = jnp.concatenate([params["wt_w"], params["loc_w"]], axis=0)
    b_cat = jnp.concatenate([params["wt_b"], params["loc_b"]], axis=0)
    proj = linear_pallas(q2, w_cat, b_cat)                                      # (L*N, 48+96)
    wt = proj[:, :n_wt].reshape(L, NM, 1, Fl * P)
    weights = jax.nn.softmax(wt, axis=3)
    grids = proj[:, n_wt:].reshape(L, NM, P, Fl, 2)

    # ---- sampling grid construction (elementwise glue, matches reference exactly) ----
    pc = jnp.repeat(jax.nn.sigmoid(jnp.transpose(pos_centers, (1, 0, 2))), M, axis=0)  # (NM,L,4)
    wh = jnp.transpose(pc[:, :, 2:], (1, 0, 2)).reshape(L, NM, 1, 1, 2)
    gp_x = (jnp.arange(P, dtype=jnp.float32) + 0.5) / P
    gp_y = (jnp.arange(M, dtype=jnp.float32) + 0.5) / M
    grid_pts = jnp.stack([jnp.broadcast_to(gp_x[None, :, None], (M, P, Fl)),
                          jnp.broadcast_to(gp_y[:, None, None], (M, P, Fl))], axis=-1)
    grid_pts = jnp.tile(grid_pts[None], (L, N, 1, 1, 1)) * wh
    boxes_xy = jnp.transpose(pc[:, :, :2] - 0.5 * pc[:, :, 2:], (1, 0, 2)).reshape(L, NM, 1, 1, 2)
    vs = 2.0 * jnp.repeat(valid_scales.reshape(1, N, 1, Fl, 2), M, axis=1)
    grids = (grids * wh / P + boxes_xy + grid_pts) * vs - 1.0                   # (L, NM, P, Fl, 2)
    grids_t = jnp.transpose(grids, (3, 1, 0, 2, 4))                             # (Fl, NM, L, P, 2)

    # ---- hoisted grid_sample preamble: flat indices + (bilinear * attention) contributions ----
    gx = jnp.transpose(grids[..., 0], (1, 3, 0, 2))                             # (NM, Fl, L, P)
    gy = jnp.transpose(grids[..., 1], (1, 3, 0, 2))
    w_attn = jnp.transpose(weights[:, :, 0, :].reshape(L, NM, Fl, P), (1, 2, 0, 3))
    W_arr = jnp.asarray([float(w) for (h, w) in spatial_shape_], jnp.float32).reshape(1, Fl, 1, 1)
    H_arr = jnp.asarray([float(h) for (h, w) in spatial_shape_], jnp.float32).reshape(1, Fl, 1, 1)
    x = (gx + 1.0) * (W_arr * 0.5) - 0.5            # align_corners=False
    y = (gy + 1.0) * (H_arr * 0.5) - 0.5
    x0 = jnp.floor(x); y0 = jnp.floor(y)
    wx1 = x - x0; wy1 = y - y0
    x0i = x0.astype(jnp.int32); y0i = y0.astype(jnp.int32)
    Wi = W_arr.astype(jnp.int32); Hi = H_arr.astype(jnp.int32)
    idx_c, con_c = [], []
    for dx, dy in ((0, 0), (1, 0), (0, 1), (1, 1)):
        xi = x0i + dx
        yi = y0i + dy
        cw = (wx1 if dx else 1.0 - wx1) * (wy1 if dy else 1.0 - wy1)
        inb = (xi >= 0) & (xi < Wi) & (yi >= 0) & (yi < Hi)
        con_c.append(jnp.where(inb, cw * w_attn, 0.0))   # OOB -> zero contribution (padding='zeros')
        idx_c.append(yi * Wi + xi)
    idx_all = jnp.stack(idx_c, axis=2).reshape(NM, Fl, LP4)    # (corner, L, P) packed on last dim
    con_all = jnp.stack(con_c, axis=2).reshape(NM, Fl, LP4)

    # constant reduction matrix folding corners + points back into per-query rows
    red_np = np.zeros((L, LP4), np.float32)
    for c4 in range(4):
        for l in range(L):
            red_np[l, c4 * L * P + l * P: c4 * L * P + (l + 1) * P] = 1.0
    red = jnp.asarray(red_np)

    # ---- grid_sample + attention-weighted reduction  (Pallas kernel, heads batched) ----
    H_blk = NM // 2 if NM % 2 == 0 else NM            # >=2 parallel grid steps when possible (v7x)
    out_blocks = sampling_pallas(vh, idx_all, con_all, red, spatial_shape_, H_blk)  # (G, L, H_blk*Ch)

    # lane-packed heads reshape straight into (L, N, C)
    out_body = jnp.transpose(out_blocks, (1, 0, 2)).reshape(L * N, C)

    # ---- output projection  (Pallas linear kernel) ----
    output = linear_pallas(out_body, params["op_w"], params["op_b"]).reshape(L, N, C)

    # ---- auxiliary attention output (pure reshapes) ----
    pts = ((grids_t + 1.0) / 2.0).reshape(Fl, N, M, L, P, 2).transpose(1, 3, 0, 2, 4, 5)
    wperm = jnp.transpose(weights, (1, 2, 0, 3))                 # (NM, 1, L, Fl*P)
    w_out = wperm.reshape(N, M, L, Fl, P).transpose(0, 2, 3, 1, 4)
    output_sample_attn = jnp.concatenate([pts, w_out[..., None]], axis=-1)
    return output, output_sample_attn


# ----------------------------------------------------------------------------------
# Pure-JAX reference (gather-based grid_sample) for validation
# ----------------------------------------------------------------------------------
def _grid_sample_ref(v, g):
    B, Ch, H, W = v.shape
    x = (g[..., 0] + 1.0) * W / 2.0 - 0.5
    y = (g[..., 1] + 1.0) * H / 2.0 - 0.5
    x0, y0 = jnp.floor(x), jnp.floor(y)
    wx1, wy1 = x - x0, y - y0

    def gather(vb, xb, yb, wb):
        inb = (xb >= 0) & (xb < W) & (yb >= 0) & (yb < H)
        xc = jnp.clip(xb, 0, W - 1).astype(jnp.int32)
        yc = jnp.clip(yb, 0, H - 1).astype(jnp.int32)
        vals = vb[:, yc, xc]
        return jnp.where(inb[None], vals, 0.0) * wb[None]

    out = jnp.zeros((B, Ch) + g.shape[1:3], jnp.float32)
    for dx, dy in ((0, 0), (1, 0), (0, 1), (1, 1)):
        wxy = (wx1 if dx else 1.0 - wx1) * (wy1 if dy else 1.0 - wy1)
        out = out + jax.vmap(gather)(v, x0 + dx, y0 + dy, wxy)
    return out


def reference_forward(params, q, k, key_padding_mask, pos_centers, spatial_shape, M, P):
    spatial_shape_, _, valid_scales = spatial_shape
    L, N, C = q.shape
    S = k.shape[2]
    Fl = len(spatial_shape_)
    NM, Ch = N * M, C // M
    value = jnp.einsum("oc,ncs->nos", params["vc_w"], k) + params["vc_b"][None, :, None]
    value = jnp.where(key_padding_mask[:, None, :], 0.0, value)
    vh = value.reshape(NM, Ch, S)
    wt = q @ params["wt_w"].T + params["wt_b"]
    weights = jax.nn.softmax(wt.reshape(L, NM, 1, Fl * P), axis=3)
    grids = (q @ params["loc_w"].T + params["loc_b"]).reshape(L, NM, P, Fl, 2)
    pc = jnp.repeat(jax.nn.sigmoid(jnp.transpose(pos_centers, (1, 0, 2))), M, axis=0)
    wh = jnp.transpose(pc[:, :, 2:], (1, 0, 2)).reshape(L, NM, 1, 1, 2)
    gp_x = (jnp.arange(P, dtype=jnp.float32) + 0.5) / P
    gp_y = (jnp.arange(M, dtype=jnp.float32) + 0.5) / M
    grid_pts = jnp.stack([jnp.broadcast_to(gp_x[None, :, None], (M, P, Fl)),
                          jnp.broadcast_to(gp_y[:, None, None], (M, P, Fl))], axis=-1)
    grid_pts = jnp.tile(grid_pts[None], (L, N, 1, 1, 1)) * wh
    boxes_xy = jnp.transpose(pc[:, :, :2] - 0.5 * pc[:, :, 2:], (1, 0, 2)).reshape(L, NM, 1, 1, 2)
    vs = 2.0 * jnp.repeat(valid_scales.reshape(1, N, 1, Fl, 2), M, axis=1)
    grids = (grids * wh / P + boxes_xy + grid_pts) * vs - 1.0
    grids = jnp.transpose(grids, (3, 1, 0, 2, 4))
    samples, off = [], 0
    for f, (H, W) in enumerate(spatial_shape_):
        vlev = vh[:, :, off:off + H * W].reshape(NM, Ch, H, W)
        samples.append(_grid_sample_ref(vlev, grids[f]))
        off += H * W
    samples = jnp.concatenate(samples, axis=-1)
    wperm = jnp.transpose(weights, (1, 2, 0, 3))
    out = jnp.sum(samples * wperm, axis=-1)
    out = jnp.transpose(out, (2, 0, 1)).reshape(L, N, C)
    out = out @ params["op_w"].T + params["op_b"]
    pts = ((grids + 1.0) / 2.0).reshape(Fl, N, M, L, P, 2).transpose(1, 3, 0, 2, 4, 5)
    w_out = wperm.reshape(N, M, L, Fl, P).transpose(0, 2, 3, 1, 4)
    attn = jnp.concatenate([pts, w_out[..., None]], axis=-1)
    return out, attn


# ----------------------------------------------------------------------------------
if __name__ == "__main__":
    D_MODEL, M_HEADS, P_POINTS = 32, 4, 4
    SPATIAL = ((8, 8), (4, 4), (2, 2))
    N_LEVELS = len(SPATIAL)
    N_BATCH, L_QUERY = 2, 8
    S_TOTAL = sum(h * w for h, w in SPATIAL)

    key = jax.random.PRNGKey(0)
    ks = jax.random.split(key, 12)

    def xavier(kk, shape):
        bound = (6.0 / (shape[0] + shape[1])) ** 0.5
        return jax.random.uniform(kk, shape, jnp.float32, -bound, bound)

    # NOTE: the reference _reset_parameters zero-inits sampling_locs / sampling_weight;
    # we use small deterministic random values so the sampling path is non-trivial.
    params = {
        "vc_w": xavier(ks[0], (D_MODEL, D_MODEL)),
        "vc_b": jnp.zeros((D_MODEL,), jnp.float32),
        "op_w": xavier(ks[1], (D_MODEL, D_MODEL)),
        "op_b": jnp.zeros((D_MODEL,), jnp.float32),
        "loc_w": 0.05 * jax.random.normal(ks[2], (M_HEADS * P_POINTS * N_LEVELS * 2, D_MODEL), jnp.float32),
        "loc_b": 0.05 * jax.random.normal(ks[3], (M_HEADS * P_POINTS * N_LEVELS * 2,), jnp.float32),
        "wt_w": 0.05 * jax.random.normal(ks[4], (M_HEADS * N_LEVELS * P_POINTS, D_MODEL), jnp.float32),
        "wt_b": 0.05 * jax.random.normal(ks[5], (M_HEADS * N_LEVELS * P_POINTS,), jnp.float32),
    }

    q = jax.random.normal(ks[6], (L_QUERY, N_BATCH, D_MODEL), jnp.float32)
    k_feat = jax.random.normal(ks[7], (N_BATCH, D_MODEL, S_TOTAL), jnp.float32)
    pos_centers = jax.random.normal(ks[8], (L_QUERY, N_BATCH, 4), jnp.float32)
    valid_scales = jax.random.uniform(ks[9], (N_BATCH, N_LEVELS, 2), jnp.float32, 0.8, 1.0)
    valid_sizes = jnp.tile(jnp.array([[float(w), float(h)] for h, w in SPATIAL], jnp.float32)[None],
                           (N_BATCH, 1, 1))
    key_padding_mask = jnp.zeros((N_BATCH, S_TOTAL), bool).at[1, -6:].set(True)
    spatial_shape = (SPATIAL, valid_sizes, valid_scales)

    out, attn = sampling_attention_ra_forward(params, q, None, k_feat, None,
                                              key_padding_mask, pos_centers, spatial_shape,
                                              M_HEADS, P_POINTS)
    out = jax.block_until_ready(out)
    attn = jax.block_until_ready(attn)

    ref_out, ref_attn = reference_forward(params, q, k_feat, key_padding_mask,
                                          pos_centers, spatial_shape, M_HEADS, P_POINTS)
    np.testing.assert_allclose(np.asarray(out), np.asarray(ref_out), rtol=2e-3, atol=2e-3)
    np.testing.assert_allclose(np.asarray(attn), np.asarray(ref_attn), rtol=2e-3, atol=2e-3)
    print("KERNEL_OK")
</pallas_src>

<mosaic_0001>
module attributes {stable_mosaic.version = 11 : i64} {
  func.func @_value_conv_kernel(%arg0: i32, %arg1: memref<32x168xf32, #tpu.memory_space<vmem>>, %arg2: memref<1x168xf32, #tpu.memory_space<vmem>>, %arg3: memref<32x32xf32, #tpu.memory_space<vmem>>, %arg4: memref<32x1xf32, #tpu.memory_space<vmem>>, %arg5: memref<32x168xf32, #tpu.memory_space<vmem>>) attributes {dimension_semantics = [#tpu.dimension_semantics<arbitrary>], iteration_bounds = array<i64: 1>, scalar_prefetch = 0 : i64, scratch_operands = 0 : i64, tpu.core_type = #tpu.core_type<tc>, window_params = [{pipeline_mode = #tpu.pipeline_mode<synchronous>, transform_indices = @transform_0, window_bounds = array<i64: 32, 168>}, {pipeline_mode = #tpu.pipeline_mode<synchronous>, transform_indices = @transform_1, window_bounds = array<i64: 1, 168>}, {pipeline_mode = #tpu.pipeline_mode<synchronous>, transform_indices = @transform_2, window_bounds = array<i64: 32, 32>}, {pipeline_mode = #tpu.pipeline_mode<synchronous>, transform_indices = @transform_3, window_bounds = array<i64: 32, 1>}, {pipeline_mode = #tpu.pipeline_mode<synchronous>, transform_indices = @transform_4, window_bounds = array<i64: 32, 168>}]} {
    %c0 = arith.constant 0 : index
    %c0_0 = arith.constant 0 : index
    %0 = vector.load %arg3[%c0, %c0_0] : memref<32x32xf32, #tpu.memory_space<vmem>>, vector<32x32xf32>
    %c0_1 = arith.constant 0 : index
    %c0_2 = arith.constant 0 : index
    %1 = vector.load %arg1[%c0_1, %c0_2] : memref<32x168xf32, #tpu.memory_space<vmem>>, vector<32x168xf32>
    %cst = arith.constant dense<0.000000e+00> : vector<32x168xf32>
    %2 = tpu.matmul %0, %1, %cst {dimension_numbers = #tpu.dot_dimension_numbers<[1], [0], [0], [1], [0, 0, 1, 1], [], []>} : vector<32x32xf32>, vector<32x168xf32>, vector<32x168xf32> -> vector<32x168xf32>
    %c0_3 = arith.constant 0 : index
    %c0_4 = arith.constant 0 : index
    %3 = vector.load %arg4[%c0_3, %c0_4] : memref<32x1xf32, #tpu.memory_space<vmem>>, vector<32x1xf32>
    %4 = vector.broadcast %3 : vector<32x1xf32> to vector<32x168xf32>
    %5 = arith.addf %2, %4 : vector<32x168xf32>
    %c0_5 = arith.constant 0 : index
    %c0_6 = arith.constant 0 : index
    %6 = vector.load %arg2[%c0_5, %c0_6] : memref<1x168xf32, #tpu.memory_space<vmem>>, vector<1x168xf32>
    %cst_7 = arith.constant 1.000000e+00 : f32
    %7 = vector.broadcast %cst_7 : f32 to vector<1x168xf32>
    %8 = arith.subf %7, %6 : vector<1x168xf32>
    %9 = vector.broadcast %8 : vector<1x168xf32> to vector<32x168xf32>
    %10 = arith.mulf %5, %9 : vector<32x168xf32>
    %c0_8 = arith.constant 0 : index
    %c0_9 = arith.constant 0 : index
    %11 = vector.load %arg5[%c0_8, %c0_9] : memref<32x168xf32, #tpu.memory_space<vmem>>, vector<32x168xf32>
    tpu.vector_store %arg5[%c0_8, %c0_9], %10 {strides = array<i32>} : memref<32x168xf32, #tpu.memory_space<vmem>>, vector<32x168xf32>,
    return
  }
  func.func @transform_0(%arg0: i32) -> (i32, i32) {
    %c0_i32 = arith.constant 0 : i32
    %c0_i32_0 = arith.constant 0 : i32
    %c0_i32_1 = arith.constant 0 : i32
    return %c0_i32, %c0_i32_0 : i32, i32
  }
  func.func @transform_1(%arg0: i32) -> (i32, i32) {
    %c0_i32 = arith.constant 0 : i32
    %c0_i32_0 = arith.constant 0 : i32
    %c0_i32_1 = arith.constant 0 : i32
    return %c0_i32, %c0_i32_0 : i32, i32
  }
  func.func @transform_2(%arg0: i32) -> (i32, i32) {
    %c0_i32 = arith.constant 0 : i32
    %c0_i32_0 = arith.constant 0 : i32
    %c0_i32_1 = arith.constant 0 : i32
    return %c0_i32, %c0_i32_0 : i32, i32
  }
  func.func @transform_3(%arg0: i32) -> (i32, i32) {
    %c0_i32 = arith.constant 0 : i32
    %c0_i32_0 = arith.constant 0 : i32
    %c0_i32_1 = arith.constant 0 : i32
    return %c0_i32, %c0_i32_0 : i32, i32
  }
  func.func @transform_4(%arg0: i32) -> (i32, i32) {
    %c0_i32 = arith.constant 0 : i32
    %c0_i32_0 = arith.constant 0 : i32
    %c0_i32_1 = arith.constant 0 : i32
    return %c0_i32, %c0_i32_0 : i32, i32
  }
}

</mosaic_0001>

<llo_original>
// kernel: tpu_custom_call.1
$region0: #{tpu_custom_call.1}
  #allocation0 [shape = 'u32[]', space=smem, size = 0x4, offset = 0x4, fixed_abs, tag = 'smem constant byte address 0x4 - core index']
  #allocation1 [shape = 'u32[144,128]{1,0:T(1,128)}', space=vmem, size = 0x12000, scoped, tag = 'internal scratch']
  %s0 = inlined_call_operand.hbm [shape: f32[32,168], index: 0, kind: input, shape index: {}]
  %s1 = inlined_call_operand.vmem [shape: f32[1,168], index: 1, kind: input, shape index: {}]
  %s2 = inlined_call_operand.vmem [shape: f32[32,32], index: 2, kind: input, shape index: {}]
  %s3 = inlined_call_operand.vmem [shape: f32[32,1], index: 3, kind: input, shape index: {}]
  %s4 = inlined_call_operand.hbm [shape: f32[32,168], index: 4, kind: output, shape index: {}]
  %s5 = sld [smem:[#allocation0]]
  $region30: #{tpu_custom_call.1} parent=0
    _
  %s7 = ssub.s32 1, %s5
  %s8 = scalar_select 0, %s7, %s5
  $region1: #{tpu_custom_call.1} parent=0
    #allocation2 [shape = 'u8[32768]{0}', space=vmem, size = 0x8000, scoped, tag = 'input window, operand 0, single buffered']
    #allocation3 [shape = 's32[1]{0}', space=sflag, size = 0x4, scoped, tag = 'scoped memory for tpu_custom_call.1']
    #allocation4 [shape = 's32[1]{0}', space=sflag, size = 0x4, scoped, tag = 'scoped memory for tpu_custom_call.1']
    #allocation5 [shape = 'u8[32768]{0}', space=vmem, size = 0x8000, scoped, tag = 'output window, operand 0, single buffered']
    %9 = vsyncpa [#allocation3], 0
    %10 = vsyncpa [#allocation4], 0
    // Predicated region
    $region2: #{tpu_custom_call.1} parent=1 // pred_check
      _
    $region3: #{tpu_custom_call.1} parent=1 // pred_check_branch
      %12 = sbr.rel (0) target = $region5
    $region4: #{tpu_custom_call.1} parent=1 // pred_region
      %s14 = ssub.s32 1024, 1024
      %15 = vsyncadd [#allocation3], %s14
      %s16 = sshll.u32 [#allocation2], 4
      %s17 = int_to_ptr.vmem [resolvable:$true] %s16
      %22 = dma.hbm_to_vmem [thread:$0]  %s0, 1024, %s17, [#allocation3], 256, 256, 16
    $region5: #{tpu_custom_call.1} parent=1 // pred_fallthru
      _
    // Predicated region
    $region6: #{tpu_custom_call.1} parent=1 // pred_check
      _
    $region7: #{tpu_custom_call.1} parent=1 // pred_check_branch
      %24 = sbr.rel (0) target = $region9
    $region8: #{tpu_custom_call.1} parent=1 // pred_region
      _
    $region9: #{tpu_custom_call.1} parent=1 // pred_fallthru
      _
    // Predicated region
    $region10: #{tpu_custom_call.1} parent=1 // pred_check
      _
    $region11: #{tpu_custom_call.1} parent=1 // pred_check_branch
      %26 = sbr.rel (0) target = $region13
    $region12: #{tpu_custom_call.1} parent=1 // pred_region
      _
    $region13: #{tpu_custom_call.1} parent=1 // pred_fallthru
      _
    // Predicated region
    $region14: #{tpu_custom_call.1} parent=1 // pred_check
      _
    $region15: #{tpu_custom_call.1} parent=1 // pred_check_branch
      %28 = sbr.rel (0) target = $region17
    $region16: #{tpu_custom_call.1} parent=1 // pred_region
      _
    $region17: #{tpu_custom_call.1} parent=1 // pred_fallthru
      _
    // Predicated region
    $region18: #{tpu_custom_call.1} parent=1 // pred_check
      _
    $region19: #{tpu_custom_call.1} parent=1 // pred_check_branch
      %30 = sbr.rel (0) target = $region21
    $region20: #{tpu_custom_call.1} parent=1 // pred_region
      %31 = dma.done [#allocation3], 1024
    $region21: #{tpu_custom_call.1} parent=1 // pred_fallthru
      _
    %v32 = vld [vmem:[%s2] sm:$0xff]
    %v33 = vld [vmem:[%s2 + $0x8] sm:$0xff]
    %v34 = vld [vmem:[%s2 + $0x10] sm:$0xff]
    %v35 = vld [vmem:[%s2 + $0x18] sm:$0xff]
    %v36 = vld [vmem:[#allocation2] sm:$0xff]
    %v37 = vld [vmem:[#allocation2 + $0x8] sm:$0xff]
    %v38 = vld [vmem:[#allocation2 + $0x10] sm:$0xff]
    %v39 = vld [vmem:[#allocation2 + $0x18] sm:$0xff]
    %v40 = vld [vmem:[#allocation2 + $0x20] sm:$0xff]
    %v41 = vld [vmem:[#allocation2 + $0x28] sm:$0xff]
    %v42 = vld [vmem:[#allocation2 + $0x30] sm:$0xff]
    %v43 = vld [vmem:[#allocation2 + $0x38] sm:$0xff]
    %v44 = vld [vmem:[%s3] sm:$0xff]
    %v45 = vld [vmem:[%s3 + $0x8] sm:$0xff]
    %v46 = vld [vmem:[%s3 + $0x10] sm:$0xff]
    %v47 = vld [vmem:[%s3 + $0x18] sm:$0xff]
    %49 = vset.pattern.permute.xlu0 0
    %50 = vperm.xlu0 %49, %v44
    %v51 = vpop.permute.xlu0 %50
    %54 = vset.pattern.permute.xlu0 0
    %55 = vperm.xlu0 %54, %v45
    %v56 = vpop.permute.xlu0 %55
    %59 = vset.pattern.permute.xlu0 0
    %60 = vperm.xlu0 %59, %v46
    %v61 = vpop.permute.xlu0 %60
    %64 = vset.pattern.permute.xlu0 0
    %65 = vperm.xlu0 %64, %v47
    %v66 = vpop.permute.xlu0 %65
    %vm68 = vcmask 261120
    %v70 = vsel %vm68, %v32, 0
    %v73 = vsel %vm68, %v33, 0
    %v76 = vsel %vm68, %v34, 0
    %v79 = vsel %vm68, %v35, 0
    %81 = vmatprep.subr.mxu0 %v37
    %82 = vmatpush1.msra.mxu0 %v36
    %83 = vmatprep.subr.mxu0 %v39
    %84 = vmatpush1.msra.mxu0 %v38
    %85 = vmatprep.subr.mxu0 %v41
    %86 = vmatpush1.msra.mxu0 %v40
    %87 = vmatprep.subr.mxu0 %v43
    %88 = vmatpush1.msra.mxu0 %v42
    %89 = vmatprep.subr.mxu0 0.0
    %90 = vmatpush1.msra.mxu0 0.0
    %91 = vmatprep.subr.mxu0 0.0
    %92 = vmatpush1.msra.mxu0 0.0
    %93 = vmatprep.subr.mxu0 0.0
    %94 = vmatpush1.msra.mxu0 0.0
    %95 = vmatprep.subr.mxu0 0.0
    %96 = vmatpush1.msra.mxu0 0.0
    %97 = vmatprep.subr.mxu0 0.0
    %98 = vmatpush1.msra.mxu0 0.0
    %99 = vmatprep.subr.mxu0 0.0
    %100 = vmatpush1.msra.mxu0 0.0
    %101 = vmatprep.subr.mxu0 0.0
    %102 = vmatpush1.msra.mxu0 0.0
    %103 = vmatprep.subr.mxu0 0.0
    %104 = vmatpush1.msra.mxu0 0.0
    %105 = vmatprep.subr.mxu0 0.0
    %106 = vmatpush1.msra.mxu0 0.0
    %107 = vmatprep.subr.mxu0 0.0
    %108 = vmatpush1.msra.mxu0 0.0
    %109 = vmatprep.subr.mxu0 0.0
    %110 = vmatpush1.msra.mxu0 0.0
    %111 = vmatprep.subr.mxu0 0.0
    %112 = vmatpush1.msra.mxu0 0.0
    %113 = vmatprep.subr.mxu0 0.0
    %114 = vmatpush1.msra.mxu0 0.0
    %115 = vmatprep.subr.mxu0 0.0
    %116 = vmatpush1.msra.mxu0 0.0
    %117 = vmatprep.subr.mxu0 0.0
    %118 = vmatpush1.msra.mxu0 0.0
    %119 = vmatprep.subr.mxu0 0.0
    %120 = vmatpush1.msra.mxu0 0.0
    %121 = vmatprep.subr.mxu0 0.0
    %122 = vmatpush1.msra.mxu0 0.0
    %123 = vmatprep.subr.mxu0 0.0
    %124 = vmatpush1.msra.mxu0 0.0
    %125 = vmatprep.subr.mxu0 0.0
    %126 = vmatpush1.msra.mxu0 0.0
    %127 = vmatprep.subr.mxu0 0.0
    %128 = vmatpush1.msra.mxu0 0.0
    %129 = vmatprep.subr.mxu0 0.0
    %130 = vmatpush1.msra.mxu0 0.0
    %131 = vmatprep.subr.mxu0 0.0
    %132 = vmatpush1.msra.mxu0 0.0
    %133 = vmatprep.subr.mxu0 0.0
    %134 = vmatpush1.msra.mxu0 0.0
    %135 = vmatprep.subr.mxu0 0.0
    %136 = vmatpush1.msra.mxu0 0.0
    %137 = vmatprep.subr.mxu0 0.0
    %138 = vmatpush1.msra.mxu0 0.0
    %139 = vmatprep.subr.mxu0 0.0
    %140 = vmatpush1.msra.mxu0 0.0
    %141 = vmatprep.subr.mxu0 0.0
    %142 = vmatpush1.msra.mxu0 0.0
    %143 = vmatprep.subr.mxu0 0.0
    %144 = vmatpush1.msra.mxu0 0.0
    %145 = vmatprep.mubr.f32.mxu0 0.0
    %146 = vmatmul.mubr.f32.gmra.mrb[0].mxu0 %v70
    %v147 = vpop.f32.mrb[0].mxu0
    %v148 = vadd.f32 %v51, %v147
    %v149 = vpop.f32.mrb[0].mxu0
    %v150 = vadd.f32 %v51, %v149
    %151 = vmatprep.mubr.f32.mxu0 0.0
    %152 = vmatmul.mubr.f32.gmra.mrb[0].mxu0 %v73
    %v153 = vpop.f32.mrb[0].mxu0
    %v154 = vadd.f32 %v56, %v153
    %v155 = vpop.f32.mrb[0].mxu0
    %v156 = vadd.f32 %v56, %v155
    %157 = vmatprep.mubr.f32.mxu0 0.0
    %158 = vmatmul.mubr.f32.gmra.mrb[0].mxu0 %v76
    %v159 = vpop.f32.mrb[0].mxu0
    %v160 = vadd.f32 %v61, %v159
    %v161 = vpop.f32.mrb[0].mxu0
    %v162 = vadd.f32 %v61, %v161
    %163 = vmatprep.mubr.f32.mxu0 0.0
    %164 = vmatmul.mubr.f32.gmra.mrb[0].mxu0 %v79
    %v165 = vpop.f32.mrb[0].mxu0
    %v166 = vadd.f32 %v66, %v165
    %v167 = vpop.f32.mrb[0].mxu0
    %v168 = vadd.f32 %v66, %v167
    %169 = vdwg.mxu0
    %v170 = vld [vmem:[%s1] sm:$0x3]
    %v171 = vsub.f32 1.0, %v170
    %v173 = vlaneseq
    %v174 = vshrl.u32 %v173, 7
    %v175 = vsub.s32 0, %v174
    %v176 = vrot.slane %v171, %v175
    %v177 = vlaneseq
    %v178 = vshrl.u32 %v177, 7
    %v179 = vsub.s32 1, %v178
    %v180 = vrot.slane %v171, %v179
    %v183 = vmul.f32 %v148, %v176
    %v184 = vmul.f32 %v150, %v180
    %v185 = vmul.f32 %v154, %v176
    %v186 = vmul.f32 %v156, %v180
    %v187 = vmul.f32 %v160, %v176
    %v188 = vmul.f32 %v162, %v180
    %v189 = vmul.f32 %v166, %v176
    %v190 = vmul.f32 %v168, %v180
    %191 = vst [vmem:[#allocation5] sm:$0xff] %v183
    %vm192 = vcmask 326656
    %193 = vst.msk [vmem:[#allocation5 + $0x8] sm:$0xff] %vm192, %v184
    %194 = vst [vmem:[#allocation5 + $0x10] sm:$0xff] %v185
    %195 = vst.msk [vmem:[#allocation5 + $0x18] sm:$0xff] %vm192, %v186
    %196 = vst [vmem:[#allocation5 + $0x20] sm:$0xff] %v187
    %197 = vst.msk [vmem:[#allocation5 + $0x28] sm:$0xff] %vm192, %v188
    %198 = vst [vmem:[#allocation5 + $0x30] sm:$0xff] %v189
    %199 = vst.msk [vmem:[#allocation5 + $0x38] sm:$0xff] %vm192, %v190
    // Predicated region
    $region22: #{tpu_custom_call.1} parent=1 // pred_check
      _
    $region23: #{tpu_custom_call.1} parent=1 // pred_check_branch
      %201 = sbr.rel (0) target = $region25
    $region24: #{tpu_custom_call.1} parent=1 // pred_region
      %s203 = ssub.s32 1024, 1024
      %204 = vsyncadd [#allocation4], %s203
      %s205 = sshll.u32 [#allocation5], 4
      %s206 = int_to_ptr.vmem [resolvable:$true] %s205
      %211 = dma.vmem_to_hbm [thread:$0]  %s206, 1024, %s4, [#allocation4], 256, 256, 16
    $region25: #{tpu_custom_call.1} parent=1 // pred_fallthru
      _
    // Predicated region
    $region26: #{tpu_custom_call.1} parent=1 // pred_check
      _
    $region27: #{tpu_custom_call.1} parent=1 // pred_check_branch
      %213 = sbr.rel (0) target = $region29
    $region28: #{tpu_custom_call.1} parent=1 // pred_region
      %214 = dma.done [#allocation4], 1024
    $region29: #{tpu_custom_call.1} parent=1 // pred_fallthru
      _
    %215 = vsyncpa [#allocation3], 1
    %216 = vsyncpa [#allocation4], 1

</llo_original>
